<compile_context>
chip_gen: v5e
topology: v5e:2x2
jax: 0.10.0
libtpu: 0.0.40
codegen_flags: <defaults>
</compile_context>

<pallas_src>
import jax
import jax.numpy as jnp
from jax import lax
from jax.experimental import pallas as pl
from jax.experimental.pallas import tpu as pltpu


def _revert_kernel(idx_ref, data_ref, mask_ref, out_ref):
    # idx_ref:  (TB, 1+L, 1) int32  — [0 ; revert_idx + 1] (shifted in wrapper)
    # data_ref: (TB, 1+S, D)        — row 0 = global token, rows 1.. = visible
    # mask_ref: (1, D)              — mask token
    # out_ref:  (TB, 1+L, D)        — row 0 = global token, rows 1.. = reverted
    TB, R, D = data_ref.shape              # R = 1 + S
    Lp1 = idx_ref.shape[1]                 # 1 + L

    if jnp.issubdtype(out_ref.dtype, jnp.floating):
        compute_dtype = out_ref.dtype      # bf16 stays bf16 (exact for one-hot)
    else:
        compute_dtype = jnp.float32

    idx = idx_ref[...]                                     # (TB, 1+L, 1) int32
    # Shifted indices >= R select the mask token; clamp for safe one-hot build.
    idx_c = jnp.clip(idx, 0, R - 1)                        # (TB, 1+L, 1)

    # One-hot selector built directly in (TB, 1+L, 1+S): contraction dim (1+S)
    # sits on LHS lanes / RHS sublanes — the MXU's natural orientation.
    col_iota = lax.broadcasted_iota(jnp.int32, (TB, Lp1, R), 2)
    sel = (col_iota == idx_c).astype(compute_dtype)        # (TB, 1+L, 1+S)

    data = data_ref[...].astype(compute_dtype)             # single aligned read
    # gathered[b, l, d] = data[b, idx_c[b, l], d]
    gathered = jnp.einsum("bls,bsd->bld", sel, data,
                          preferred_element_type=compute_dtype)

    # Blend the mask token where the (shifted) index points past the data rows.
    is_mask = idx >= R                                     # (TB, 1+L, 1)
    mask_row = mask_ref[...].astype(compute_dtype)[None]   # (1, 1, D)
    gathered = jnp.where(is_mask, mask_row, gathered)

    out_ref[...] = gathered.astype(out_ref.dtype)          # single aligned store


def non_temporal_revert(data, revert_idx, mask_token, *, batch_tile=None,
                        vmem_budget_bytes=20 << 20):
    """Pallas equivalent of NonTemporalRevert.forward for one column."""
    B, one_plus_S, D = data.shape
    L = revert_idx.shape[-1]
    Lp1 = 1 + L

    # Shift indices by +1 (row 0 of `data` is the global token) and prepend a
    # 0 index so row 0 of the output is the global token. The kernel then does
    # fully (8,128)-aligned reads/stores of both blocks — no row-1 slices.
    idx_shift = revert_idx.astype(jnp.int32) + 1                      # (B, L)
    idx_full = jnp.concatenate(
        [jnp.zeros((B, 1), jnp.int32), idx_shift], axis=1)            # (B, 1+L)
    idx3 = idx_full[:, :, None]                                       # (B, 1+L, 1)

    # VMEM-aware batch tile: double-buffered I/O blocks + selector/gather
    # intermediates must fit a conservative scoped budget (safe on v7x too).
    dtype_bytes = jnp.dtype(data.dtype).itemsize
    cbytes = dtype_bytes if jnp.issubdtype(data.dtype, jnp.floating) else 4
    per_b = (2 * dtype_bytes * D * (one_plus_S + Lp1)      # double-buffered I/O
             + cbytes * Lp1 * (one_plus_S + D)             # selector + gathered
             + 4 * Lp1 * one_plus_S                        # int32 iota
             + 2 * 4 * Lp1)                                # index block
    tb_fit = max(1, vmem_budget_bytes // max(per_b, 1))
    TB = int(min(batch_tile if batch_tile else B, B, tb_fit))
    if B >= 2:
        # Keep >= 2 grid steps so both v7x TensorCores get work.
        TB = min(TB, -(-B // 2))
    TB = max(TB, 1)

    cost = pl.CostEstimate(
        flops=int(2 * B * Lp1 * one_plus_S * D),
        transcendentals=0,
        bytes_accessed=int((B * one_plus_S * D + B * Lp1 * D) * dtype_bytes
                           + B * Lp1 * 4),
    )

    return pl.pallas_call(
        _revert_kernel,
        out_shape=jax.ShapeDtypeStruct((B, Lp1, D), data.dtype),
        grid_spec=pltpu.PrefetchScalarGridSpec(
            num_scalar_prefetch=0,
            grid=(pl.cdiv(B, TB),),
            in_specs=[
                pl.BlockSpec((TB, Lp1, 1), lambda b: (b, 0, 0)),          # idx
                pl.BlockSpec((TB, one_plus_S, D), lambda b: (b, 0, 0)),   # data
                pl.BlockSpec((1, D), lambda b: (0, 0)),                   # mask
            ],
            out_specs=pl.BlockSpec((TB, Lp1, D), lambda b: (b, 0, 0)),
        ),
        compiler_params=pltpu.CompilerParams(
            dimension_semantics=("parallel",),
            vmem_limit_bytes=48 << 20,
        ),
        cost_estimate=cost,
    )(idx3, data, mask_token)


if __name__ == "__main__":
    B, S, L, D = 2, 8, 12, 32   # seq_len after masking = S, full length = L

    key = jax.random.PRNGKey(0)
    k_data, k_mask, k_perm = jax.random.split(key, 3)

    data = jax.random.normal(k_data, (B, 1 + S, D), dtype=jnp.float32)
    mask_token = 0.02 * jax.random.normal(k_mask, (1, D), dtype=jnp.float32)
    revert_idx = jnp.stack(
        [jax.random.permutation(jax.random.fold_in(k_perm, b), L) for b in range(B)]
    ).astype(jnp.int32)                                          # (B, L)

    out = non_temporal_revert(data, revert_idx, mask_token)
    out = jax.block_until_ready(out)

    # Pure-JAX reference (mirrors the PyTorch forward)
    valid_plus_mask = jnp.concatenate(
        [data[:, 1:, :], jnp.broadcast_to(mask_token[None, :, :], (B, L - S, D))],
        axis=1)
    gathered_ref = jnp.take_along_axis(valid_plus_mask, revert_idx[:, :, None], axis=1)
    ref = jnp.concatenate([data[:, :1, :], gathered_ref], axis=1)

    assert out.shape == (B, 1 + L, D)
    assert jnp.allclose(out, ref, atol=1e-5), float(jnp.max(jnp.abs(out - ref)))
    print("KERNEL_OK")
</pallas_src>

<mosaic_0001>
module attributes {stable_mosaic.version = 11 : i64} {
  func.func @_revert_kernel(%arg0: i32, %arg1: memref<1x13x1xi32, #tpu.memory_space<vmem>>, %arg2: memref<1x9x32xf32, #tpu.memory_space<vmem>>, %arg3: memref<1x32xf32, #tpu.memory_space<vmem>>, %arg4: memref<1x13x32xf32, #tpu.memory_space<vmem>>) attributes {dimension_semantics = [#tpu.dimension_semantics<parallel>], iteration_bounds = array<i64: 2>, scalar_prefetch = 0 : i64, scratch_operands = 0 : i64, tpu.core_type = #tpu.core_type<tc>, window_params = [{transform_indices = @transform_0, window_bounds = array<i64: 1, 13, 1>}, {transform_indices = @transform_1, window_bounds = array<i64: 1, 9, 32>}, {pipeline_mode = #tpu.pipeline_mode<synchronous>, transform_indices = @transform_2, window_bounds = array<i64: 1, 32>}, {transform_indices = @transform_3, window_bounds = array<i64: 1, 13, 32>}]} {
    %c0 = arith.constant 0 : index
    %c0_0 = arith.constant 0 : index
    %c0_1 = arith.constant 0 : index
    %0 = vector.load %arg1[%c0, %c0_0, %c0_1] : memref<1x13x1xi32, #tpu.memory_space<vmem>>, vector<1x13x1xi32>
    %c0_i32 = arith.constant 0 : i32
    %c8_i32 = arith.constant 8 : i32
    %1 = vector.broadcast %c0_i32 : i32 to vector<1x13x1xi32>
    %2 = arith.maxsi %1, %0 : vector<1x13x1xi32>
    %3 = vector.broadcast %c8_i32 : i32 to vector<1x13x1xi32>
    %4 = arith.minsi %3, %2 : vector<1x13x1xi32>
    %5 = tpu.iota {dimensions = array<i32: 2>} : vector<1x13x9xi32>
    %6 = vector.broadcast %4 : vector<1x13x1xi32> to vector<1x13x9xi32>
    %7 = arith.cmpi eq, %5, %6 : vector<1x13x9xi32>
    %8 = arith.extui %7 : vector<1x13x9xi1> to vector<1x13x9xi32>
    %9 = arith.sitofp %8 : vector<1x13x9xi32> to vector<1x13x9xf32>
    %c0_2 = arith.constant 0 : index
    %c0_3 = arith.constant 0 : index
    %c0_4 = arith.constant 0 : index
    %10 = vector.load %arg2[%c0_2, %c0_3, %c0_4] : memref<1x9x32xf32, #tpu.memory_space<vmem>>, vector<1x9x32xf32>
    "tpu.trace_start"() <{level = 10 : i32, message = "bls,bsd->bld"}> : () -> ()
    %cst = arith.constant dense<0.000000e+00> : vector<1x13x32xf32>
    %11 = tpu.matmul %9, %10, %cst {dimension_numbers = #tpu.dot_dimension_numbers<[2], [1], [1], [2], [0, 0, 0, 1, 1, 2], [0], [0]>} : vector<1x13x9xf32>, vector<1x9x32xf32>, vector<1x13x32xf32> -> vector<1x13x32xf32>
    %c9_i32 = arith.constant 9 : i32
    "tpu.trace_stop"() : () -> ()
    %12 = vector.broadcast %c9_i32 : i32 to vector<1x13x1xi32>
    %13 = arith.cmpi sge, %0, %12 : vector<1x13x1xi32>
    %c0_5 = arith.constant 0 : index
    %c0_6 = arith.constant 0 : index
    %14 = vector.load %arg3[%c0_5, %c0_6] : memref<1x32xf32, #tpu.memory_space<vmem>>, vector<1x32xf32>
    %15 = vector.shape_cast %14 : vector<1x32xf32> to vector<1x1x32xf32>
    %16 = vector.shape_cast %13 : vector<1x13x1xi1> to vector<1x13x1xi1>
    %17 = vector.broadcast %16 : vector<1x13x1xi1> to vector<1x13x32xi1>
    %18 = vector.shape_cast %15 : vector<1x1x32xf32> to vector<1x1x32xf32>
    %19 = vector.broadcast %18 : vector<1x1x32xf32> to vector<1x13x32xf32>
    %20 = arith.select %17, %19, %11 : vector<1x13x32xi1>, vector<1x13x32xf32>
    %c0_7 = arith.constant 0 : index
    %c0_8 = arith.constant 0 : index
    %c0_9 = arith.constant 0 : index
    %21 = vector.load %arg4[%c0_7, %c0_8, %c0_9] : memref<1x13x32xf32, #tpu.memory_space<vmem>>, vector<1x13x32xf32>
    tpu.vector_store %arg4[%c0_7, %c0_8, %c0_9], %20 {strides = array<i32>} : memref<1x13x32xf32, #tpu.memory_space<vmem>>, vector<1x13x32xf32>,
    return
  }
  func.func @transform_0(%arg0: i32) -> (i32, i32, i32) {
    %c0_i32 = arith.constant 0 : i32
    %c0_i32_0 = arith.constant 0 : i32
    %c0_i32_1 = arith.constant 0 : i32
    return %arg0, %c0_i32, %c0_i32_0 : i32, i32, i32
  }
  func.func @transform_1(%arg0: i32) -> (i32, i32, i32) {
    %c0_i32 = arith.constant 0 : i32
    %c0_i32_0 = arith.constant 0 : i32
    %c0_i32_1 = arith.constant 0 : i32
    return %arg0, %c0_i32, %c0_i32_0 : i32, i32, i32
  }
  func.func @transform_2(%arg0: i32) -> (i32, i32) {
    %c0_i32 = arith.constant 0 : i32
    %c0_i32_0 = arith.constant 0 : i32
    %c0_i32_1 = arith.constant 0 : i32
    return %c0_i32, %c0_i32_0 : i32, i32
  }
  func.func @transform_3(%arg0: i32) -> (i32, i32, i32) {
    %c0_i32 = arith.constant 0 : i32
    %c0_i32_0 = arith.constant 0 : i32
    %c0_i32_1 = arith.constant 0 : i32
    return %arg0, %c0_i32, %c0_i32_0 : i32, i32, i32
  }
}

</mosaic_0001>

<llo_original>
// kernel: tpu_custom_call.1
$region0: #{tpu_custom_call.1}
  #allocation0 [shape = 'u32[]', space=smem, size = 0x4, offset = 0x4, fixed_abs, tag = 'smem constant byte address 0x4 - core index']
  #allocation1 [shape = 'u32[72,128]{1,0:T(1,128)}', space=vmem, size = 0x9000, scoped, tag = 'internal scratch']
  %s0 = inlined_call_operand.vmem [shape: s32[2,13,1], index: 0, kind: input, shape index: {}]
  %s1 = inlined_call_operand.vmem [shape: f32[2,9,32], index: 1, kind: input, shape index: {}]
  %s2 = inlined_call_operand.vmem [shape: f32[1,32], index: 2, kind: input, shape index: {}]
  %s3 = inlined_call_operand.vmem [shape: f32[2,13,32], index: 3, kind: output, shape index: {}]
  %s4 = sld [smem:[#allocation0]]
  $region45: #{tpu_custom_call.1} parent=0
    _
  %s6 = ssub.s32 1, %s4
  %s7 = scalar_select 0, %s6, %s4
  loop: start=0, step=1, limit=4
  $region2: #{tpu_custom_call.1} parent=0 // loop_pre_header
    _
  $region3: #{tpu_custom_call.1} parent=0 // loop_header
    %s9 = sphi 0, %s13
    %p10 = scmp.ge.s32.totalorder %s9, 4
    %s19 = sphi 0, %s21
    %s22 = sphi 0, %s19
    %s23 = sphi 0, %s22
    %s39 = sphi 0, %s23
    %s45 = sphi 0, %s47
    %s48 = sphi 0, %s45
    %s49 = sphi 0, %s48
    %s65 = sphi 0, %s49
    %s69 = sphi 0, %s69
    %s71 = sphi 0, %s69
    %s72 = sphi 0, %s71
    %s86 = sphi 0, %s72
    %s92 = sphi 0, %s94
    %s95 = sphi 0, %s92
    %s96 = sphi 0, %s95
    %s112 = sphi 0, %s96
  $region4: #{tpu_custom_call.1} parent=0 // loop_header_branch
    %12 = sbr.rel (%p10) target = $region8
  $region5: #{tpu_custom_call.1} parent=0 // loop_body
    %s14 = ssub.s32 %s9, 1
    %s15 = ssub.s32 %s9, 2
    %s16 = sadd.s32 %s9, 1
    %s17 = ssub.s32 %s9, %s16
    %p18 = scmp.eq.s32.totalorder %s17, 0
    %s20 = sadd.s32 %s19, 1
    %s21 = scalar_select %p18, %s19, %s20
    %p24 = pneg %p18
    %p25 = scmp.eq.s32.totalorder %s9, 1
    %p26 = por %p24, %p25
    %p27 = scmp.ne.s32.totalorder %s19, %s22
    %p28 = scmp.eq.s32.totalorder %s9, 0
    %p29 = por %p27, %p28
    %p30 = scmp.ne.s32.totalorder %s19, %s22
    %p31 = scmp.eq.s32.totalorder %s14, 1
    %p32 = por %p30, %p31
    %p33 = scmp.ne.s32.totalorder %s22, %s23
    %p34 = scmp.eq.s32.totalorder %s14, 0
    %p35 = por %p33, %p34
    %p36 = scmp.ne.s32.totalorder %s22, %s23
    %p37 = scmp.eq.s32.totalorder %s15, 1
    %p38 = por %p36, %p37
    %p40 = scmp.ne.s32.totalorder %s23, %s39
    %p41 = scmp.eq.s32.totalorder %s15, 0
    %p42 = por %p40, %p41
    %s43 = ssub.s32 %s9, %s16
    %p44 = scmp.eq.s32.totalorder %s43, 0
    %s46 = sadd.s32 %s45, 1
    %s47 = scalar_select %p44, %s45, %s46
    %p50 = pneg %p44
    %p51 = scmp.eq.s32.totalorder %s9, 1
    %p52 = por %p50, %p51
    %p53 = scmp.ne.s32.totalorder %s45, %s48
    %p54 = scmp.eq.s32.totalorder %s9, 0
    %p55 = por %p53, %p54
    %p56 = scmp.ne.s32.totalorder %s45, %s48
    %p57 = scmp.eq.s32.totalorder %s14, 1
    %p58 = por %p56, %p57
    %p59 = scmp.ne.s32.totalorder %s48, %s49
    %p60 = scmp.eq.s32.totalorder %s14, 0
    %p61 = por %p59, %p60
    %p62 = scmp.ne.s32.totalorder %s48, %s49
    %p63 = scmp.eq.s32.totalorder %s15, 1
    %p64 = por %p62, %p63
    %p66 = scmp.ne.s32.totalorder %s49, %s65
    %p67 = scmp.eq.s32.totalorder %s15, 0
    %p68 = por %p66, %p67
    %s70 = sadd.s32 %s69, 1
    %p73 = scmp.eq.s32.totalorder %s9, 1
    %p74 = scmp.ne.s32.totalorder %s69, %s71
    %p75 = scmp.eq.s32.totalorder %s9, 0
    %p76 = por %p74, %p75
    %p77 = scmp.ne.s32.totalorder %s69, %s71
    %p78 = scmp.eq.s32.totalorder %s14, 1
    %p79 = por %p77, %p78
    %p80 = scmp.ne.s32.totalorder %s71, %s72
    %p81 = scmp.eq.s32.totalorder %s14, 0
    %p82 = por %p80, %p81
    %p83 = scmp.ne.s32.totalorder %s71, %s72
    %p84 = scmp.eq.s32.totalorder %s15, 1
    %p85 = por %p83, %p84
    %p87 = scmp.ne.s32.totalorder %s72, %s86
    %p88 = scmp.eq.s32.totalorder %s15, 0
    %p89 = por %p87, %p88
    %s90 = ssub.s32 %s9, %s16
    %p91 = scmp.eq.s32.totalorder %s90, 0
    %s93 = sadd.s32 %s92, 1
    %s94 = scalar_select %p91, %s92, %s93
    %p97 = pneg %p91
    %p98 = scmp.eq.s32.totalorder %s9, 1
    %p99 = por %p97, %p98
    %p100 = scmp.ne.s32.totalorder %s92, %s95
    %p101 = scmp.eq.s32.totalorder %s9, 0
    %p102 = por %p100, %p101
    %p103 = scmp.ne.s32.totalorder %s92, %s95
    %p104 = scmp.eq.s32.totalorder %s14, 1
    %p105 = por %p103, %p104
    %p106 = scmp.ne.s32.totalorder %s95, %s96
    %p107 = scmp.eq.s32.totalorder %s14, 0
    %p108 = por %p106, %p107
    %p109 = scmp.ne.s32.totalorder %s95, %s96
    %p110 = scmp.eq.s32.totalorder %s15, 1
    %p111 = por %p109, %p110
    %p113 = scmp.ne.s32.totalorder %s96, %s112
    %p114 = scmp.eq.s32.totalorder %s15, 0
    %p115 = por %p113, %p114
    %p116 = scmp.le.s32.totalorder 1, %s9
    %p117 = scmp.lt.s32.totalorder %s9, 3
    %p118 = pnand %p116, %p117
    %p119 = pneg %p118
    // Predicated region
    $region9: #{tpu_custom_call.1} parent=5 // pred_check
      _
    $region10: #{tpu_custom_call.1} parent=5 // pred_check_branch
      %121 = sbr.rel (%p118) target = $region12
    $region11: #{tpu_custom_call.1} parent=5 // pred_region
      %s122 = ssub.s32 %s9, 1
      // Predicated region
      $region13: #{tpu_custom_call.1} parent=11 // pred_check
        %p123 = pneg %p82
      $region14: #{tpu_custom_call.1} parent=11 // pred_check_branch
        %125 = sbr.rel (%p123) target = $region16
      $region15: #{tpu_custom_call.1} parent=11 // pred_region
        _
      $region16: #{tpu_custom_call.1} parent=11 // pred_fallthru
        _
    $region12: #{tpu_custom_call.1} parent=5 // pred_fallthru
      _
    %p126 = scmp.lt.s32.totalorder %s9, 2
    // Predicated region
    $region17: #{tpu_custom_call.1} parent=5 // pred_check
      %p127 = pneg %p126
    $region18: #{tpu_custom_call.1} parent=5 // pred_check_branch
      %129 = sbr.rel (%p127) target = $region20
    $region19: #{tpu_custom_call.1} parent=5 // pred_region
      // Predicated region
      $region21: #{tpu_custom_call.1} parent=19 // pred_check
        %p130 = pneg %p29
      $region22: #{tpu_custom_call.1} parent=19 // pred_check_branch
        %132 = sbr.rel (%p130) target = $region24
      $region23: #{tpu_custom_call.1} parent=19 // pred_region
        %p133 = scmp.lt.s32.totalorder %s9, 1
        %s134 = scalar_select %p133, %s9, 1
        %s135 = smul.addr %s134, 2
        %s136 = smul.addr %s135, 8
        %s137 = scalar_lea.vmem %s0, %s136
      $region24: #{tpu_custom_call.1} parent=19 // pred_fallthru
        _
      // Predicated region
      $region25: #{tpu_custom_call.1} parent=19 // pred_check
        %p138 = pneg %p55
      $region26: #{tpu_custom_call.1} parent=19 // pred_check_branch
        %140 = sbr.rel (%p138) target = $region28
      $region27: #{tpu_custom_call.1} parent=19 // pred_region
        %p141 = scmp.lt.s32.totalorder %s9, 1
        %s142 = scalar_select %p141, %s9, 1
        %s143 = smul.addr %s142, 2
        %s144 = smul.addr %s143, 8
        %s145 = scalar_lea.vmem %s1, %s144
      $region28: #{tpu_custom_call.1} parent=19 // pred_fallthru
        _
    $region20: #{tpu_custom_call.1} parent=5 // pred_fallthru
      _
    %p146 = scmp.le.s32.totalorder 1, %s9
    %p147 = scmp.lt.s32.totalorder %s9, 3
    %p148 = pnand %p146, %p147
    %p149 = pneg %p148
    // Predicated region
    $region29: #{tpu_custom_call.1} parent=5 // pred_check
      _
    $region30: #{tpu_custom_call.1} parent=5 // pred_check_branch
      %151 = sbr.rel (%p148) target = $region32
    $region31: #{tpu_custom_call.1} parent=5 // pred_region
      %s152 = ssub.s32 %s9, 1
      %p153 = scmp.lt.s32.totalorder %s14, 1
      %s154 = scalar_select %p153, %s14, 1
      %s155 = smul.addr %s154, 2
      %s156 = smul.addr %s155, 8
      %s157 = scalar_lea.vmem %s0, %s156
      %p158 = pneg %p35
      %p159 = pneg %p32
      %p160 = scmp.lt.s32.totalorder %s14, 1
      %s161 = scalar_select %p160, %s14, 1
      %s162 = smul.addr %s161, 2
      %s163 = smul.addr %s162, 8
      %s164 = scalar_lea.vmem %s1, %s163
      %p165 = pneg %p61
      %p166 = pneg %p58
      %p167 = pneg %p82
      %p168 = pneg %p79
      %p169 = pneg %p108
      %p170 = pneg %p105
      %p171 = scmp.lt.s32.totalorder %s14, 1
      %s172 = scalar_select %p171, %s14, 1
      %s173 = smul.addr %s172, 2
      %s174 = smul.addr %s173, 8
      %s175 = scalar_lea.vmem %s3, %s174
      %p176 = scmp.lt.s32.totalorder %s14, 1
      %s177 = scalar_select %p176, %s14, 1
      %s178 = smul.addr %s177, 2
      %s179 = smul.addr %s178, 8
      %s180 = scalar_lea.vmem %s0, %s179
      %p181 = scmp.lt.s32.totalorder %s14, 1
      %s182 = scalar_select %p181, %s14, 1
      %s183 = smul.addr %s182, 2
      %s184 = smul.addr %s183, 8
      %s185 = scalar_lea.vmem %s1, %s184
      %p186 = scmp.lt.s32.totalorder %s14, 1
      %s187 = scalar_select %p186, %s14, 1
      %s188 = smul.addr %s187, 2
      %s189 = smul.addr %s188, 8
      %s190 = scalar_lea.vmem %s3, %s189
      %v191 = vld [vmem:[%s180] sm:$0xff]
      %v192 = vld [vmem:[%s180 + $0x8] sm:$0x1f]
      %vm193 = vcmp.gt.s32.totalorder %v191, 0
      %v194 = vsel %vm193, %v191, 0
      %vm195 = vcmp.gt.s32.totalorder %v192, 0
      %v196 = vsel %vm195, %v192, 0
      %vm197 = vcmp.lt.s32.totalorder %v194, 8
      %v198 = vsel %vm197, %v194, 8
      %vm199 = vcmp.lt.s32.totalorder %v196, 8
      %v200 = vsel %vm199, %v196, 8
      %v201 = vlaneseq
      %v202 = vand.u32 %v201, 127
      %203 = vset.pattern.permute.xlu0 0
      %204 = vperm.xlu0 %203, %v198
      %v205 = vpop.permute.xlu0 %204
      %206 = vset.pattern.permute.xlu0 0
      %207 = vperm.xlu0 %206, %v200
      %v208 = vpop.permute.xlu0 %207
      %vm209 = vcmp.eq.s32.totalorder %v202, %v205
      %vm210 = vcmp.eq.s32.totalorder %v202, %v208
      %v211 = vsel %vm209, 1, 0
      %v212 = vsel %vm210, 1, 0
      %v213 = vcvt.s32.f32 %v211
      %v214 = vcvt.s32.f32 %v212
      %v215 = vld [vmem:[%s185] sm:$0xff]
      %v216 = vld [vmem:[%s185 + $0x8] sm:$0x1]
      %vm217 = vcmask 72704
      %v219 = vsel %vm217, %v213, 0
      %v222 = vsel %vm217, %v214, 0
      %vm224 = vcmask 1040384
      %v226 = vsel %vm224, %v216, 0
      %228 = vmatpush.msra.mxu0 0.0
      %229 = vmatpush.msra.mxu0 0.0
      %230 = vmatpush.msra.mxu0 0.0
      %231 = vmatpush.msra.mxu0 0.0
      %232 = vmatpush.msra.mxu0 0.0
      %233 = vmatpush.msra.mxu0 0.0
      %234 = vmatpush.msra.mxu0 0.0
      %235 = vmatpush.msra.mxu0 0.0
      %236 = vmatpush.msra.mxu0 0.0
      %237 = vmatpush.msra.mxu0 0.0
      %238 = vmatpush.msra.mxu0 0.0
      %239 = vmatpush.msra.mxu0 0.0
      %240 = vmatpush.msra.mxu0 0.0
      %241 = vmatpush.msra.mxu0 0.0
      %242 = vmatpush.msra.mxu0 %v226
      %243 = vmatpush.msra.mxu0 %v215
      %244 = vmatmul.f32.gmra.mxu0 %v219
      %v245 = vpop.f32.mrf.mxu0
      %v246 = vadd.f32 0.0, %v245
      %247 = vmatmul.f32.gmra.mxu0 %v222
      %v248 = vpop.f32.mrf.mxu0
      %v249 = vadd.f32 0.0, %v248
      %250 = vdwg.mxu0
      %vm251 = vcmp.ge.s32.totalorder %v191, 9
      %vm252 = vcmp.ge.s32.totalorder %v192, 9
      %v253 = vld [vmem:[%s2] sm:$0x1]
      %v254 = vsel %vm251, 1, 0
      %v255 = vsel %vm252, 1, 0
      %256 = vset.pattern.permute.xlu0 0
      %257 = vperm.xlu0 %256, %v254
      %v258 = vpop.permute.xlu0 %257
      %259 = vset.pattern.permute.xlu0 0
      %260 = vperm.xlu0 %259, %v255
      %v261 = vpop.permute.xlu0 %260
      %vm262 = vcmp.eq.s32.totalorder %v258, 1
      %vm263 = vcmp.eq.s32.totalorder %v261, 1
      %v265 = vperm.slane %v253, 0
      %v267 = vsel %vm262, %v265, %v246
      %v268 = vsel %vm263, %v265, %v249
      %vm269 = vcmask 261120
      %270 = vst.msk [vmem:[%s190] sm:$0xff] %vm269, %v267
      %vm271 = vcmask 258048
      %272 = vst.msk [vmem:[%s190 + $0x8] sm:$0x1f] %vm271, %v268
      %p273 = scmp.lt.s32.totalorder %s14, 1
      %s274 = scalar_select %p273, %s14, 1
      %s275 = smul.addr %s274, 2
      %s276 = smul.addr %s275, 8
      %s277 = scalar_lea.vmem %s3, %s276
      // Predicated region
      $region33: #{tpu_custom_call.1} parent=31 // pred_check
        %p278 = pneg %p105
      $region34: #{tpu_custom_call.1} parent=31 // pred_check_branch
        %280 = sbr.rel (%p278) target = $region36
      $region35: #{tpu_custom_call.1} parent=31 // pred_region
        _
      $region36: #{tpu_custom_call.1} parent=31 // pred_fallthru
        _
    $region32: #{tpu_custom_call.1} parent=5 // pred_fallthru
      _
    %p281 = scmp.le.s32.totalorder 2, %s9
    // Predicated region
    $region37: #{tpu_custom_call.1} parent=5 // pred_check
      %p282 = pneg %p281
    $region38: #{tpu_custom_call.1} parent=5 // pred_check_branch
      %284 = sbr.rel (%p282) target = $region40
    $region39: #{tpu_custom_call.1} parent=5 // pred_region
      %s285 = ssub.s32 %s9, 2
      // Predicated region
      $region41: #{tpu_custom_call.1} parent=39 // pred_check
        %p286 = pneg %p111
      $region42: #{tpu_custom_call.1} parent=39 // pred_check_branch
        %288 = sbr.rel (%p286) target = $region44
      $region43: #{tpu_custom_call.1} parent=39 // pred_region
        %p289 = scmp.lt.s32.totalorder %s15, 1
        %s290 = scalar_select %p289, %s15, 1
        %s291 = smul.addr %s290, 2
        %s292 = smul.addr %s291, 8
        %s293 = scalar_lea.vmem %s3, %s292
      $region44: #{tpu_custom_call.1} parent=39 // pred_fallthru
        _
    $region40: #{tpu_custom_call.1} parent=5 // pred_fallthru
      _
  $region6: #{tpu_custom_call.1} parent=0 // loop_footer
    %s13 = sadd.s32 1, %s9
  $region7: #{tpu_custom_call.1} parent=0 // loop_footer_branch
    %8 = sbr.rel target = $region3
  $region8: #{tpu_custom_call.1} parent=0 // loop_exit
    _

</llo_original>
